<compile_context>
chip_gen: v7x
topology: tpu7x:2x2x1
jax: 0.10.0
libtpu: 0.0.40
codegen_flags: <defaults>
</compile_context>

<pallas_src>
import math

import jax
import jax.numpy as jnp
from jax import lax
from jax.experimental import pallas as pl
from jax.experimental.pallas import tpu as pltpu


_VMEM_BUDGET = 24 * 1024 * 1024   # double-buffered working-set target (v7x safe)
_VMEM_LIMIT = 48 * 1024 * 1024    # scoped VMEM limit (<= v7x 64 MiB physical)


def _round_up(x, m):
    return ((x + m - 1) // m) * m


def _sublane(esize):
    # sublane packing granularity: f32 -> 8, bf16 -> 16, int8/fp8 -> 32
    return {4: 8, 2: 16, 1: 32}.get(esize, 8)


# ----------------------------- Pallas kernels -----------------------------

def _conv_ds_kernel(xs_ref, t_ref, w_ref, b_ref, o_ref):
    """One (Cout_tile, Lout_tile) block of Conv1d(k=4, s=2, p=1).

    xs_ref: (2*Cin, Lt)  stacked phase pairs: rows [0:Cin] = x_pad[:, 2j],
                         rows [Cin:2*Cin] = x_pad[:, 2j+1]
    t_ref:  (2*Cin, 1)   phase-pair column one past this tile (taps 2/3 overlap)
    w_ref:  (2, Cout_t, 2*Cin)  pair-stacked weights: [w0|w1] and [w2|w3]
    b_ref:  (Cout_t, 1)  f32 bias column
    o_ref:  (Cout_t, Lt)
    """
    lt = o_ref.shape[-1]
    xs = xs_ref[...]

    # Pair column j+1: shift left by one output position; the wrapped last
    # column is replaced by the tail column (handles the tile boundary).
    col = lax.broadcasted_iota(jnp.int32, xs.shape, 1)
    xs_next = jnp.where(col == lt - 1, t_ref[...],
                        pltpu.roll(xs, shift=lt - 1, axis=1))

    # out[:, j] = b + [w0|w1] @ xs[:, j] + [w2|w3] @ xs[:, j+1]
    # 2 MXU dots with K = 2*Cin, single f32 accumulate pass.
    acc = jnp.dot(w_ref[0], xs, preferred_element_type=jnp.float32)
    acc = acc + jnp.dot(w_ref[1], xs_next, preferred_element_type=jnp.float32)
    o_ref[...] = (acc + b_ref[...]).astype(o_ref.dtype)


def _avgpool_kernel(x_ref, p_ref, o_ref):
    # (rt, 2*lt) raw block @ (2*lt, lt) pooling matrix -> (rt, lt) means.
    # The pair de-interleave is done by the matmul itself (f32 accumulation).
    o_ref[...] = jnp.dot(x_ref[...], p_ref[...],
                         preferred_element_type=jnp.float32).astype(o_ref.dtype)


# ------------------------------ host wrappers ------------------------------

def _conv_tiles(cin2, cout_p, l_out, esize):
    """Pick (Cout_tile, Lout_tile).  Prefer tn == full Cout (activations are
    then DMA'd exactly once), then the largest lane-dense L tile that keeps the
    double-buffered working set under _VMEM_BUDGET."""
    sub = _sublane(esize)

    def usage(tn_, lt_):
        xs_b = cin2 * lt_ * esize              # stacked-phase activation block
        tl_b = cin2 * 128 * esize              # tail column (lane padded)
        w_b = 2 * tn_ * cin2 * esize           # two pair-stacked weight tiles
        b_b = tn_ * 128 * 4                    # bias column (lane padded, f32)
        o_b = tn_ * lt_ * esize
        return 2 * (xs_b + tl_b + w_b + b_b + o_b)   # x2: double buffering

    lt_max = max(128, min(2048, _round_up(l_out, 128)))
    tn = cout_p
    while True:
        lt = lt_max
        while lt > 128 and usage(tn, lt) > _VMEM_BUDGET:
            lt = max(128, _round_up(lt // 2, 128))
        if usage(tn, lt) <= _VMEM_BUDGET or tn <= sub:
            return tn, lt
        tn = max(sub, _round_up(tn // 2, sub))


@jax.jit
def conv1d_downsample(x, w, b):
    """Conv1d(C_in, C_out, kernel_size=4, stride=2, padding=1), NCL layout."""
    N, Cin, L = x.shape
    Cout, Cin_w, K = w.shape
    assert Cin == Cin_w and K == 4
    L_out = (L - 2) // 2 + 1

    esize = jnp.dtype(x.dtype).itemsize
    sub = _sublane(esize)
    Cinp = _round_up(Cin, sub)
    cin2 = 2 * Cinp
    tn, lt = _conv_tiles(cin2, _round_up(Cout, sub), L_out, esize)
    Cop = _round_up(Cout, tn)
    Lp = _round_up(L_out, lt)
    n_ct = Cop // tn
    n_lt = Lp // lt

    # --- host glue (single fused pass): pad once, phase-slice, channel-stack ---
    right = 2 * Lp + 1 - L                                   # >= 0 always
    x_big = jnp.pad(x, ((0, 0), (0, Cinp - Cin), (1, right)))  # (N, Cinp, 2*Lp+2)
    xs_main = jnp.concatenate(
        [x_big[:, :, 0:2 * Lp:2],                            # even phase
         x_big[:, :, 1:2 * Lp:2]], axis=1)                   # odd phase -> (N, cin2, Lp)
    # one-past-the-tile overlap columns (tiny: n_lt columns)
    tails = jnp.concatenate(
        [x_big[:, :, 2 * lt:2 * Lp + 1:2 * lt],
         x_big[:, :, 2 * lt + 1:2 * Lp + 2:2 * lt]], axis=1)  # (N, cin2, n_lt)
    tails = jnp.transpose(tails, (0, 2, 1))[..., None]        # (N, n_lt, cin2, 1)

    # weights: pair-stacked (K = 2*Cin) matrices; bias as f32 column
    w_p = jnp.pad(w.astype(x.dtype),
                  ((0, Cop - Cout), (0, Cinp - Cin), (0, 0)))  # (Cop, Cinp, 4)
    w_pairs = jnp.stack(
        [jnp.concatenate([w_p[:, :, 0], w_p[:, :, 1]], axis=1),
         jnp.concatenate([w_p[:, :, 2], w_p[:, :, 3]], axis=1)], axis=0)  # (2, Cop, cin2)
    b_col = jnp.pad(b.astype(jnp.float32), (0, Cop - Cout)).reshape(Cop, 1)

    cost = pl.CostEstimate(
        flops=8 * N * Cout * Cin * L_out,
        transcendentals=0,
        bytes_accessed=(N * Cin * L + Cout * Cin * 4 + Cout
                        + N * Cout * L_out) * esize)

    out = pl.pallas_call(
        _conv_ds_kernel,
        out_shape=jax.ShapeDtypeStruct((N, Cop, Lp), x.dtype),
        grid=(N, n_ct, n_lt),
        in_specs=[
            pl.BlockSpec((None, cin2, lt), lambda n, j, i: (n, 0, i)),          # phases
            pl.BlockSpec((None, None, cin2, 1), lambda n, j, i: (n, i, 0, 0)),  # tail
            pl.BlockSpec((2, tn, cin2), lambda n, j, i: (0, j, 0)),             # weights
            pl.BlockSpec((tn, 1), lambda n, j, i: (j, 0)),                      # bias
        ],
        out_specs=pl.BlockSpec((None, tn, lt), lambda n, j, i: (n, j, i)),
        compiler_params=pltpu.CompilerParams(
            dimension_semantics=("parallel", "parallel", "parallel"),
            vmem_limit_bytes=_VMEM_LIMIT),
        cost_estimate=cost,
    )(xs_main, tails, w_pairs, b_col)

    return out[:, :Cout, :L_out]


@jax.jit
def avg_pool1d_downsample(x):
    """avg_pool1d(kernel_size=2, stride=2), NCL layout."""
    N, C, L = x.shape
    L_out = L // 2
    R = N * C
    esize = jnp.dtype(x.dtype).itemsize
    sub = _sublane(esize)

    # lt stays 128 so arithmetic intensity (~lt/3 flop/byte for f32) keeps the
    # MXU pooling matmul HBM-bound on v5e/v6e/v7x; rt carries the block size.
    lt = 128
    rt = min(4096, _round_up(R, sub))
    while 2 * (3 * rt * lt * esize + 2 * lt * lt * esize) > _VMEM_BUDGET and rt > sub:
        rt = max(sub, _round_up(rt // 2, sub))

    Rp = _round_up(R, rt)
    Lp = _round_up(L_out, lt)
    x2 = x.reshape(R, L)[:, :2 * L_out]                      # drop odd trailing sample
    x2 = jnp.pad(x2, ((0, Rp - R), (0, 2 * Lp - 2 * L_out)))

    # (2*lt, lt) pooling matrix: P[2j, j] = P[2j+1, j] = 0.5 (exact in bf16/f32),
    # resident in VMEM (constant block index -> DMA'd once).
    pool = (0.5 * (jnp.repeat(jnp.arange(lt), 2)[:, None]
                   == jnp.arange(lt)[None, :])).astype(x.dtype)

    out = pl.pallas_call(
        _avgpool_kernel,
        out_shape=jax.ShapeDtypeStruct((Rp, Lp), x.dtype),
        grid=(Rp // rt, Lp // lt),
        in_specs=[
            pl.BlockSpec((rt, 2 * lt), lambda i, j: (i, j)),
            pl.BlockSpec((2 * lt, lt), lambda i, j: (0, 0)),
        ],
        out_specs=pl.BlockSpec((rt, lt), lambda i, j: (i, j)),
        compiler_params=pltpu.CompilerParams(
            dimension_semantics=("parallel", "parallel"),
            vmem_limit_bytes=_VMEM_LIMIT),
    )(x2, pool)
    return out[:R, :L_out].reshape(N, C, L_out)


class Downsample:
    """JAX/Pallas port of the PyTorch Downsample module."""

    def __init__(self, in_channels, with_conv, key=None):
        self.with_conv = with_conv
        if self.with_conv:
            if key is None:
                key = jax.random.PRNGKey(42)
            kw, kb = jax.random.split(key)
            K = 4
            bound = 1.0 / math.sqrt(in_channels * K)   # PyTorch Conv1d default init
            self.w = jax.random.uniform(
                kw, (in_channels, in_channels, K), jnp.float32, -bound, bound)
            self.b = jax.random.uniform(
                kb, (in_channels,), jnp.float32, -bound, bound)

    def __call__(self, x):
        if self.with_conv:
            return conv1d_downsample(x, self.w, self.b)
        return avg_pool1d_downsample(x)


# ------------------------------ pure-JAX references ------------------------------

def _conv_ref(x, w, b):
    y = lax.conv_general_dilated(
        x, w, window_strides=(2,), padding=((1, 1),),
        dimension_numbers=("NCH", "OIH", "NCH"),
        precision=lax.Precision.HIGHEST)
    return y + b[None, :, None]


def _pool_ref(x):
    N, C, L = x.shape
    return x[:, :, :(L // 2) * 2].reshape(N, C, L // 2, 2).mean(-1)


if __name__ == "__main__":
    key = jax.random.PRNGKey(0)
    kx, kp, kx2, kp2 = jax.random.split(key, 4)

    # --- small shapes (single tile per axis, exercises channel padding) ---
    N, C, L = 2, 4, 16
    x = jax.random.normal(kx, (N, C, L), jnp.float32)

    mod_conv = Downsample(C, with_conv=True, key=kp)
    y_conv = jax.block_until_ready(mod_conv(x))
    assert y_conv.shape == (N, C, L // 2), y_conv.shape
    assert jnp.allclose(y_conv, _conv_ref(x, mod_conv.w, mod_conv.b),
                        atol=1e-5, rtol=1e-5)

    mod_pool = Downsample(C, with_conv=False)
    y_pool = jax.block_until_ready(mod_pool(x))
    assert y_pool.shape == (N, C, L // 2), y_pool.shape
    assert jnp.allclose(y_pool, _pool_ref(x), atol=1e-6, rtol=1e-6)

    # --- larger shape that exercises the multi-tile (tail / roll) path along L ---
    N2, C2, L2 = 2, 16, 6144
    x2 = jax.random.normal(kx2, (N2, C2, L2), jnp.float32)

    mod_conv2 = Downsample(C2, with_conv=True, key=kp2)
    y_conv2 = jax.block_until_ready(mod_conv2(x2))
    assert y_conv2.shape == (N2, C2, L2 // 2), y_conv2.shape
    assert jnp.allclose(y_conv2, _conv_ref(x2, mod_conv2.w, mod_conv2.b),
                        atol=1e-4, rtol=1e-4)

    mod_pool2 = Downsample(C2, with_conv=False)
    y_pool2 = jax.block_until_ready(mod_pool2(x2))
    assert y_pool2.shape == (N2, C2, L2 // 2), y_pool2.shape
    assert jnp.allclose(y_pool2, _pool_ref(x2), atol=1e-6, rtol=1e-6)

    print("KERNEL_OK")
</pallas_src>

<mosaic_0001>
module attributes {stable_mosaic.version = 11 : i64} {
  func.func @_conv_ds_kernel(%arg0: i32, %arg1: i32, %arg2: i32, %arg3: memref<1x16x128xf32, #tpu.memory_space<vmem>>, %arg4: memref<1x1x16x1xf32, #tpu.memory_space<vmem>>, %arg5: memref<2x8x16xf32, #tpu.memory_space<vmem>>, %arg6: memref<8x1xf32, #tpu.memory_space<vmem>>, %arg7: memref<1x8x128xf32, #tpu.memory_space<vmem>>) attributes {dimension_semantics = [#tpu.dimension_semantics<parallel>, #tpu.dimension_semantics<parallel>, #tpu.dimension_semantics<parallel>], iteration_bounds = array<i64: 2, 1, 1>, scalar_prefetch = 0 : i64, scratch_operands = 0 : i64, tpu.core_type = #tpu.core_type<tc>, window_params = [{transform_indices = @transform_0, window_bounds = array<i64: 1, 16, 128>}, {transform_indices = @transform_1, window_bounds = array<i64: 1, 1, 16, 1>}, {transform_indices = @transform_2, window_bounds = array<i64: 2, 8, 16>}, {transform_indices = @transform_3, window_bounds = array<i64: 8, 1>}, {transform_indices = @transform_4, window_bounds = array<i64: 1, 8, 128>}]} {
    %c0 = arith.constant 0 : index
    %c0_0 = arith.constant 0 : index
    %c0_1 = arith.constant 0 : index
    %0 = vector.load %arg3[%c0, %c0_0, %c0_1] : memref<1x16x128xf32, #tpu.memory_space<vmem>>, vector<1x16x128xf32>
    %1 = vector.shape_cast %0 : vector<1x16x128xf32> to vector<16x128xf32>
    %2 = tpu.iota {dimensions = array<i32: 1>} : vector<16x128xi32>
    %c127_i32 = arith.constant 127 : i32
    %3 = vector.broadcast %c127_i32 : i32 to vector<16x128xi32>
    %4 = arith.cmpi eq, %2, %3 : vector<16x128xi32>
    %c0_2 = arith.constant 0 : index
    %c0_3 = arith.constant 0 : index
    %c0_4 = arith.constant 0 : index
    %c0_5 = arith.constant 0 : index
    %5 = vector.load %arg4[%c0_2, %c0_3, %c0_4, %c0_5] : memref<1x1x16x1xf32, #tpu.memory_space<vmem>>, vector<1x1x16x1xf32>
    %6 = vector.shape_cast %5 : vector<1x1x16x1xf32> to vector<16x1xf32>
    %c127_i32_6 = arith.constant 127 : i32
    %7 = tpu.dynamic_rotate %1 by %c127_i32_6 dim 1 : vector<16x128xf32>, i32 -> vector<16x128xf32>
    %8 = vector.shape_cast %6 : vector<16x1xf32> to vector<16x1xf32>
    %9 = vector.broadcast %8 : vector<16x1xf32> to vector<16x128xf32>
    %10 = arith.select %4, %9, %7 : vector<16x128xi1>, vector<16x128xf32>
    %c0_7 = arith.constant 0 : index
    %c0_8 = arith.constant 0 : index
    %c0_9 = arith.constant 0 : index
    %11 = vector.load %arg5[%c0_7, %c0_8, %c0_9] : memref<2x8x16xf32, #tpu.memory_space<vmem>>, vector<1x8x16xf32>
    %12 = vector.shape_cast %11 : vector<1x8x16xf32> to vector<8x16xf32>
    %cst = arith.constant dense<0.000000e+00> : vector<8x128xf32>
    %13 = tpu.matmul %12, %1, %cst {dimension_numbers = #tpu.dot_dimension_numbers<[1], [0], [0], [1], [0, 0, 1, 1], [], []>} : vector<8x16xf32>, vector<16x128xf32>, vector<8x128xf32> -> vector<8x128xf32>
    %c1 = arith.constant 1 : index
    %c0_10 = arith.constant 0 : index
    %c0_11 = arith.constant 0 : index
    %14 = vector.load %arg5[%c1, %c0_10, %c0_11] : memref<2x8x16xf32, #tpu.memory_space<vmem>>, vector<1x8x16xf32>
    %15 = vector.shape_cast %14 : vector<1x8x16xf32> to vector<8x16xf32>
    %cst_12 = arith.constant dense<0.000000e+00> : vector<8x128xf32>
    %16 = tpu.matmul %15, %10, %cst_12 {dimension_numbers = #tpu.dot_dimension_numbers<[1], [0], [0], [1], [0, 0, 1, 1], [], []>} : vector<8x16xf32>, vector<16x128xf32>, vector<8x128xf32> -> vector<8x128xf32>
    %17 = arith.addf %13, %16 : vector<8x128xf32>
    %c0_13 = arith.constant 0 : index
    %c0_14 = arith.constant 0 : index
    %18 = vector.load %arg6[%c0_13, %c0_14] : memref<8x1xf32, #tpu.memory_space<vmem>>, vector<8x1xf32>
    %19 = vector.broadcast %18 : vector<8x1xf32> to vector<8x128xf32>
    %20 = arith.addf %17, %19 : vector<8x128xf32>
    %c0_15 = arith.constant 0 : index
    %c0_16 = arith.constant 0 : index
    %c0_17 = arith.constant 0 : index
    %21 = vector.load %arg7[%c0_15, %c0_16, %c0_17] : memref<1x8x128xf32, #tpu.memory_space<vmem>>, vector<1x8x128xf32>
    %22 = vector.shape_cast %21 : vector<1x8x128xf32> to vector<8x128xf32>
    %23 = vector.shape_cast %20 : vector<8x128xf32> to vector<1x8x128xf32>
    tpu.vector_store %arg7[%c0_15, %c0_16, %c0_17], %23 {strides = array<i32>} : memref<1x8x128xf32, #tpu.memory_space<vmem>>, vector<1x8x128xf32>,
    return
  }
  func.func @transform_0(%arg0: i32, %arg1: i32, %arg2: i32) -> (i32, i32, i32) {
    %c0_i32 = arith.constant 0 : i32
    %c0_i32_0 = arith.constant 0 : i32
    return %arg0, %c0_i32, %arg2 : i32, i32, i32
  }
  func.func @transform_1(%arg0: i32, %arg1: i32, %arg2: i32) -> (i32, i32, i32, i32) {
    %c0_i32 = arith.constant 0 : i32
    %c0_i32_0 = arith.constant 0 : i32
    %c0_i32_1 = arith.constant 0 : i32
    return %arg0, %arg2, %c0_i32, %c0_i32_0 : i32, i32, i32, i32
  }
  func.func @transform_2(%arg0: i32, %arg1: i32, %arg2: i32) -> (i32, i32, i32) {
    %c0_i32 = arith.constant 0 : i32
    %c0_i32_0 = arith.constant 0 : i32
    %c0_i32_1 = arith.constant 0 : i32
    return %c0_i32, %arg1, %c0_i32_0 : i32, i32, i32
  }
  func.func @transform_3(%arg0: i32, %arg1: i32, %arg2: i32) -> (i32, i32) {
    %c0_i32 = arith.constant 0 : i32
    %c0_i32_0 = arith.constant 0 : i32
    return %arg1, %c0_i32 : i32, i32
  }
  func.func @transform_4(%arg0: i32, %arg1: i32, %arg2: i32) -> (i32, i32, i32) {
    %c0_i32 = arith.constant 0 : i32
    return %arg0, %arg1, %arg2 : i32, i32, i32
  }
}

</mosaic_0001>

<llo_original>
// kernel: conv1d_downsample.1
$region0: #{conv1d_downsample.1}
  #allocation0 [shape = 'u32[]', space=smem, size = 0x4, offset = 0x4, fixed_abs, tag = 'smem constant byte address 0x4 - core index']
  #allocation1 [shape = 'u32[144,128]{1,0:T(1,128)}', space=vmem, size = 0x12000, scoped, tag = 'internal scratch']
  %s0 = inlined_call_operand.vmem [shape: f32[2,16,128], index: 0, kind: input, shape index: {}]
  %s1 = inlined_call_operand.vmem [shape: f32[2,1,16,1], index: 1, kind: input, shape index: {}]
  %s2 = inlined_call_operand.vmem [shape: f32[2,8,16], index: 2, kind: input, shape index: {}]
  %s3 = inlined_call_operand.vmem [shape: f32[8,1], index: 3, kind: input, shape index: {}]
  %s4 = inlined_call_operand.vmem [shape: f32[2,8,128], index: 4, kind: output, shape index: {}]
  %s5 = sld [smem:[#allocation0]]
  $region49: #{conv1d_downsample.1} parent=0
    _
  %s7 = ssub.s32 1, %s5
  %s8 = scalar_select 0, %s7, %s5
  loop: start=0, step=1, limit=4
  $region2: #{conv1d_downsample.1} parent=0 // loop_pre_header
    _
  $region3: #{conv1d_downsample.1} parent=0 // loop_header
    %s10 = sphi 0, %s14
    %p11 = scmp.ge.s32.totalorder %s10, 4
    %s17 = sphi 0, %s36
    %s18 = sphi 0, %s32
    %s19 = sphi 0, %s28
    %s20 = sphi 0, %s17
    %s21 = sphi 0, %s18
    %s22 = sphi 0, %s19
    %s23 = sphi 0, %s20
    %s24 = sphi 0, %s21
    %s25 = sphi 0, %s22
    %s41 = sphi 0, %s43
    %s44 = sphi 0, %s41
    %s45 = sphi 0, %s44
    %s61 = sphi 0, %s45
    %s69 = sphi 0, %s71
    %s72 = sphi 0, %s69
    %s73 = sphi 0, %s72
    %s89 = sphi 0, %s73
    %s95 = sphi 0, %s97
    %s98 = sphi 0, %s95
    %s99 = sphi 0, %s98
    %s115 = sphi 0, %s99
    %s121 = sphi 0, %s123
    %s124 = sphi 0, %s121
    %s125 = sphi 0, %s124
    %s141 = sphi 0, %s125
    %s151 = sphi 0, %s153
    %s154 = sphi 0, %s151
    %s155 = sphi 0, %s154
    %s171 = sphi 0, %s155
  $region4: #{conv1d_downsample.1} parent=0 // loop_header_branch
    %13 = sbr.rel (%p11) target = $region8
  $region5: #{conv1d_downsample.1} parent=0 // loop_body
    %s15 = ssub.s32 %s10, 1
    %s16 = ssub.s32 %s10, 2
    %s26 = sadd.s32 1, %s19
    %p27 = scmp.ge.s32.totalorder %s26, 1
    %s28 = scalar_select %p27, 0, %s26
    %s29 = sadd.s32 1, %s18
    %s30 = scalar_select %p27, %s29, %s18
    %p31 = scmp.ge.s32.totalorder %s30, 1
    %s32 = scalar_select %p31, 0, %s30
    %s33 = sadd.s32 1, %s17
    %s34 = scalar_select %p31, %s33, %s17
    %p35 = scmp.ge.s32.totalorder %s34, 2
    %s36 = scalar_select %p35, 0, %s34
    %s37 = ssub.s32 %s17, %s36
    %s38 = ssub.s32 %s19, %s28
    %s39 = sor.u32 %s37, %s38
    %p40 = scmp.eq.s32.totalorder %s39, 0
    %s42 = sadd.s32 %s41, 1
    %s43 = scalar_select %p40, %s41, %s42
    %p46 = pneg %p40
    %p47 = scmp.eq.s32.totalorder %s10, 1
    %p48 = por %p46, %p47
    %p49 = scmp.ne.s32.totalorder %s41, %s44
    %p50 = scmp.eq.s32.totalorder %s10, 0
    %p51 = por %p49, %p50
    %p52 = scmp.ne.s32.totalorder %s41, %s44
    %p53 = scmp.eq.s32.totalorder %s15, 1
    %p54 = por %p52, %p53
    %p55 = scmp.ne.s32.totalorder %s44, %s45
    %p56 = scmp.eq.s32.totalorder %s15, 0
    %p57 = por %p55, %p56
    %p58 = scmp.ne.s32.totalorder %s44, %s45
    %p59 = scmp.eq.s32.totalorder %s16, 1
    %p60 = por %p58, %p59
    %p62 = scmp.ne.s32.totalorder %s45, %s61
    %p63 = scmp.eq.s32.totalorder %s16, 0
    %p64 = por %p62, %p63
    %s65 = ssub.s32 %s17, %s36
    %s66 = ssub.s32 %s19, %s28
    %s67 = sor.u32 %s65, %s66
    %p68 = scmp.eq.s32.totalorder %s67, 0
    %s70 = sadd.s32 %s69, 1
    %s71 = scalar_select %p68, %s69, %s70
    %p74 = pneg %p68
    %p75 = scmp.eq.s32.totalorder %s10, 1
    %p76 = por %p74, %p75
    %p77 = scmp.ne.s32.totalorder %s69, %s72
    %p78 = scmp.eq.s32.totalorder %s10, 0
    %p79 = por %p77, %p78
    %p80 = scmp.ne.s32.totalorder %s69, %s72
    %p81 = scmp.eq.s32.totalorder %s15, 1
    %p82 = por %p80, %p81
    %p83 = scmp.ne.s32.totalorder %s72, %s73
    %p84 = scmp.eq.s32.totalorder %s15, 0
    %p85 = por %p83, %p84
    %p86 = scmp.ne.s32.totalorder %s72, %s73
    %p87 = scmp.eq.s32.totalorder %s16, 1
    %p88 = por %p86, %p87
    %p90 = scmp.ne.s32.totalorder %s73, %s89
    %p91 = scmp.eq.s32.totalorder %s16, 0
    %p92 = por %p90, %p91
    %s93 = ssub.s32 %s18, %s32
    %p94 = scmp.eq.s32.totalorder %s93, 0
    %s96 = sadd.s32 %s95, 1
    %s97 = scalar_select %p94, %s95, %s96
    %p100 = pneg %p94
    %p101 = scmp.eq.s32.totalorder %s10, 1
    %p102 = por %p100, %p101
    %p103 = scmp.ne.s32.totalorder %s95, %s98
    %p104 = scmp.eq.s32.totalorder %s10, 0
    %p105 = por %p103, %p104
    %p106 = scmp.ne.s32.totalorder %s95, %s98
    %p107 = scmp.eq.s32.totalorder %s15, 1
    %p108 = por %p106, %p107
    %p109 = scmp.ne.s32.totalorder %s98, %s99
    %p110 = scmp.eq.s32.totalorder %s15, 0
    %p111 = por %p109, %p110
    %p112 = scmp.ne.s32.totalorder %s98, %s99
    %p113 = scmp.eq.s32.totalorder %s16, 1
    %p114 = por %p112, %p113
    %p116 = scmp.ne.s32.totalorder %s99, %s115
    %p117 = scmp.eq.s32.totalorder %s16, 0
    %p118 = por %p116, %p117
    %s119 = ssub.s32 %s18, %s32
    %p120 = scmp.eq.s32.totalorder %s119, 0
    %s122 = sadd.s32 %s121, 1
    %s123 = scalar_select %p120, %s121, %s122
    %p126 = pneg %p120
    %p127 = scmp.eq.s32.totalorder %s10, 1
    %p128 = por %p126, %p127
    %p129 = scmp.ne.s32.totalorder %s121, %s124
    %p130 = scmp.eq.s32.totalorder %s10, 0
    %p131 = por %p129, %p130
    %p132 = scmp.ne.s32.totalorder %s121, %s124
    %p133 = scmp.eq.s32.totalorder %s15, 1
    %p134 = por %p132, %p133
    %p135 = scmp.ne.s32.totalorder %s124, %s125
    %p136 = scmp.eq.s32.totalorder %s15, 0
    %p137 = por %p135, %p136
    %p138 = scmp.ne.s32.totalorder %s124, %s125
    %p139 = scmp.eq.s32.totalorder %s16, 1
    %p140 = por %p138, %p139
    %p142 = scmp.ne.s32.totalorder %s125, %s141
    %p143 = scmp.eq.s32.totalorder %s16, 0
    %p144 = por %p142, %p143
    %s145 = ssub.s32 %s17, %s36
    %s146 = ssub.s32 %s18, %s32
    %s147 = sor.u32 %s145, %s146
    %s148 = ssub.s32 %s19, %s28
    %s149 = sor.u32 %s147, %s148
    %p150 = scmp.eq.s32.totalorder %s149, 0
    %s152 = sadd.s32 %s151, 1
    %s153 = scalar_select %p150, %s151, %s152
    %p156 = pneg %p150
    %p157 = scmp.eq.s32.totalorder %s10, 1
    %p158 = por %p156, %p157
    %p159 = scmp.ne.s32.totalorder %s151, %s154
    %p160 = scmp.eq.s32.totalorder %s10, 0
    %p161 = por %p159, %p160
    %p162 = scmp.ne.s32.totalorder %s151, %s154
    %p163 = scmp.eq.s32.totalorder %s15, 1
    %p164 = por %p162, %p163
    %p165 = scmp.ne.s32.totalorder %s154, %s155
    %p166 = scmp.eq.s32.totalorder %s15, 0
    %p167 = por %p165, %p166
    %p168 = scmp.ne.s32.totalorder %s154, %s155
    %p169 = scmp.eq.s32.totalorder %s16, 1
    %p170 = por %p168, %p169
    %p172 = scmp.ne.s32.totalorder %s155, %s171
    %p173 = scmp.eq.s32.totalorder %s16, 0
    %p174 = por %p172, %p173
    %p175 = scmp.le.s32.totalorder 1, %s10
    %p176 = scmp.lt.s32.totalorder %s10, 3
    %p177 = pnand %p175, %p176
    %p178 = pneg %p177
    // Predicated region
    $region9: #{conv1d_downsample.1} parent=5 // pred_check
      _
    $region10: #{conv1d_downsample.1} parent=5 // pred_check_branch
      %180 = sbr.rel (%p177) target = $region12
    $region11: #{conv1d_downsample.1} parent=5 // pred_region
      %s181 = ssub.s32 %s10, 1
      // Predicated region
      $region13: #{conv1d_downsample.1} parent=11 // pred_check
        %p182 = pneg %p111
      $region14: #{conv1d_downsample.1} parent=11 // pred_check_branch
        %184 = sbr.rel (%p182) target = $region16
      $region15: #{conv1d_downsample.1} parent=11 // pred_region
        %p185 = scmp.lt.s32.totalorder %s21, 0
        %s186 = scalar_select %p185, %s21, 0
        %s187 = smul.addr %s186, 8
        %s188 = scalar_lea.vmem %s2, %s187
      $region16: #{conv1d_downsample.1} parent=11 // pred_fallthru
        _
      // Predicated region
      $region17: #{conv1d_downsample.1} parent=11 // pred_check
        %p189 = pneg %p137
      $region18: #{conv1d_downsample.1} parent=11 // pred_check_branch
        %191 = sbr.rel (%p189) target = $region20
      $region19: #{conv1d_downsample.1} parent=11 // pred_region
        %p192 = scmp.lt.s32.totalorder %s21, 0
        %s193 = scalar_select %p192, %s21, 0
        %s194 = smul.addr %s193, 8
        %s195 = scalar_lea.vmem %s3, %s194
      $region20: #{conv1d_downsample.1} parent=11 // pred_fallthru
        _
    $region12: #{conv1d_downsample.1} parent=5 // pred_fallthru
      _
    %p196 = scmp.lt.s32.totalorder %s10, 2
    // Predicated region
    $region21: #{conv1d_downsample.1} parent=5 // pred_check
      %p197 = pneg %p196
    $region22: #{conv1d_downsample.1} parent=5 // pred_check_branch
      %199 = sbr.rel (%p197) target = $region24
    $region23: #{conv1d_downsample.1} parent=5 // pred_region
      // Predicated region
      $region25: #{conv1d_downsample.1} parent=23 // pred_check
        %p200 = pneg %p51
      $region26: #{conv1d_downsample.1} parent=23 // pred_check_branch
        %202 = sbr.rel (%p200) target = $region28
      $region27: #{conv1d_downsample.1} parent=23 // pred_region
        %p203 = scmp.lt.s32.totalorder %s17, 1
        %s204 = scalar_select %p203, %s17, 1
        %p205 = scmp.lt.s32.totalorder %s19, 0
        %s206 = scalar_select %p205, %s19, 0
        %s207 = smul.addr %s204, 2
        %s208 = sadd.s32 %s206, %s207
        %s209 = smul.addr %s208, 8
        %s210 = scalar_lea.vmem %s0, %s209
      $region28: #{conv1d_downsample.1} parent=23 // pred_fallthru
        _
      // Predicated region
      $region29: #{conv1d_downsample.1} parent=23 // pred_check
        %p211 = pneg %p79
      $region30: #{conv1d_downsample.1} parent=23 // pred_check_branch
        %213 = sbr.rel (%p211) target = $region32
      $region31: #{conv1d_downsample.1} parent=23 // pred_region
        %p214 = scmp.lt.s32.totalorder %s17, 1
        %s215 = scalar_select %p214, %s17, 1
        %p216 = scmp.lt.s32.totalorder %s19, 0
        %s217 = scalar_select %p216, %s19, 0
        %s218 = smul.addr %s217, 2
        %s219 = smul.addr %s215, 2
        %s220 = sadd.s32 %s218, %s219
        %s221 = smul.addr %s220, 8
        %s222 = scalar_lea.vmem %s1, %s221
      $region32: #{conv1d_downsample.1} parent=23 // pred_fallthru
        _
    $region24: #{conv1d_downsample.1} parent=5 // pred_fallthru
      _
    %p223 = scmp.le.s32.totalorder 1, %s10
    %p224 = scmp.lt.s32.totalorder %s10, 3
    %p225 = pnand %p223, %p224
    %p226 = pneg %p225
    // Predicated region
    $region33: #{conv1d_downsample.1} parent=5 // pred_check
      _
    $region34: #{conv1d_downsample.1} parent=5 // pred_check_branch
      %228 = sbr.rel (%p225) target = $region36
    $region35: #{conv1d_downsample.1} parent=5 // pred_region
      %s229 = ssub.s32 %s10, 1
      %p230 = scmp.lt.s32.totalorder %s20, 1
      %s231 = scalar_select %p230, %s20, 1
      %p232 = scmp.lt.s32.totalorder %s22, 0
      %s233 = scalar_select %p232, %s22, 0
      %s234 = smul.addr %s231, 2
      %s235 = sadd.s32 %s233, %s234
      %s236 = smul.addr %s235, 8
      %s237 = scalar_lea.vmem %s0, %s236
      %p238 = pneg %p57
      %p239 = pneg %p54
      %p240 = scmp.lt.s32.totalorder %s20, 1
      %s241 = scalar_select %p240, %s20, 1
      %p242 = scmp.lt.s32.totalorder %s22, 0
      %s243 = scalar_select %p242, %s22, 0
      %s244 = smul.addr %s243, 2
      %s245 = smul.addr %s241, 2
      %s246 = sadd.s32 %s244, %s245
      %s247 = smul.addr %s246, 8
      %s248 = scalar_lea.vmem %s1, %s247
      %p249 = pneg %p85
      %p250 = pneg %p82
      %p251 = scmp.lt.s32.totalorder %s21, 0
      %s252 = scalar_select %p251, %s21, 0
      %s253 = smul.addr %s252, 8
      %s254 = scalar_lea.vmem %s2, %s253
      %p255 = pneg %p111
      %p256 = pneg %p108
      %p257 = scmp.lt.s32.totalorder %s21, 0
      %s258 = scalar_select %p257, %s21, 0
      %s259 = smul.addr %s258, 8
      %s260 = scalar_lea.vmem %s3, %s259
      %p261 = pneg %p137
      %p262 = pneg %p134
      %p263 = pneg %p167
      %p264 = pneg %p164
      %p265 = scmp.lt.s32.totalorder %s20, 1
      %s266 = scalar_select %p265, %s20, 1
      %p267 = scmp.lt.s32.totalorder %s21, 0
      %s268 = scalar_select %p267, %s21, 0
      %p269 = scmp.lt.s32.totalorder %s22, 0
      %s270 = scalar_select %p269, %s22, 0
      %s271 = sadd.s32 %s270, %s268
      %s272 = sadd.s32 %s271, %s266
      %s273 = smul.addr %s272, 8
      %s274 = scalar_lea.vmem %s4, %s273
      %p275 = scmp.lt.s32.totalorder %s20, 1
      %s276 = scalar_select %p275, %s20, 1
      %p277 = scmp.lt.s32.totalorder %s22, 0
      %s278 = scalar_select %p277, %s22, 0
      %s279 = smul.addr %s276, 2
      %s280 = sadd.s32 %s278, %s279
      %s281 = smul.addr %s280, 8
      %s282 = scalar_lea.vmem %s0, %s281
      %p283 = scmp.lt.s32.totalorder %s20, 1
      %s284 = scalar_select %p283, %s20, 1
      %p285 = scmp.lt.s32.totalorder %s22, 0
      %s286 = scalar_select %p285, %s22, 0
      %s287 = smul.addr %s286, 2
      %s288 = smul.addr %s284, 2
      %s289 = sadd.s32 %s287, %s288
      %s290 = smul.addr %s289, 8
      %s291 = scalar_lea.vmem %s1, %s290
      %p292 = scmp.lt.s32.totalorder %s21, 0
      %s293 = scalar_select %p292, %s21, 0
      %s294 = smul.addr %s293, 8
      %s295 = scalar_lea.vmem %s2, %s294
      %p296 = scmp.lt.s32.totalorder %s21, 0
      %s297 = scalar_select %p296, %s21, 0
      %s298 = smul.addr %s297, 8
      %s299 = scalar_lea.vmem %s3, %s298
      %p300 = scmp.lt.s32.totalorder %s20, 1
      %s301 = scalar_select %p300, %s20, 1
      %p302 = scmp.lt.s32.totalorder %s21, 0
      %s303 = scalar_select %p302, %s21, 0
      %p304 = scmp.lt.s32.totalorder %s22, 0
      %s305 = scalar_select %p304, %s22, 0
      %s306 = sadd.s32 %s305, %s303
      %s307 = sadd.s32 %s306, %s301
      %s308 = smul.addr %s307, 8
      %s309 = scalar_lea.vmem %s4, %s308
      %v310 = vld [vmem:[%s282] sm:$0xff]
      %v311 = vld [vmem:[%s282 + $0x8] sm:$0xff]
      %v312 = vlaneseq
      %v313 = vand.u32 %v312, 127
      %vm314 = vcmp.eq.s32.totalorder %v313, 127
      %v315 = vld [vmem:[%s291] sm:$0xff]
      %v316 = vld [vmem:[%s291 + $0x8] sm:$0xff]
      %317 = vrot.lane.b32.xlu0 %v310, 127
      %v318 = vpop.permute.xlu0 %317
      %319 = vrot.lane.b32.xlu0 %v311, 127
      %v320 = vpop.permute.xlu0 %319
      %322 = vset.pattern.permute.xlu0 0
      %323 = vperm.xlu0 %322, %v315
      %v324 = vpop.permute.xlu0 %323
      %327 = vset.pattern.permute.xlu0 0
      %328 = vperm.xlu0 %327, %v316
      %v329 = vpop.permute.xlu0 %328
      %v331 = vsel %vm314, %v324, %v318
      %v332 = vsel %vm314, %v329, %v320
      %v333 = vld [vmem:[%s295] sm:$0xff]
      %s334 = scalar_lea.vmem %s295, 8
      %v335 = vld [vmem:[%s334] sm:$0xff]
      %vm336 = vcmask 130048
      %v338 = vsel %vm336, %v335, 0
      %340 = vmatprep.subr.mxu0 0.0
      %341 = vmatpush1.msra.mxu0 %v331
      %342 = vmatprep.subr.mxu0 0.0
      %343 = vmatpush1.msra.mxu0 %v332
      %344 = vmatprep.subr.mxu0 0.0
      %345 = vmatpush1.msra.mxu0 0.0
      %346 = vmatprep.subr.mxu0 0.0
      %347 = vmatpush1.msra.mxu0 0.0
      %348 = vmatprep.subr.mxu0 0.0
      %349 = vmatpush1.msra.mxu0 0.0
      %350 = vmatprep.subr.mxu0 0.0
      %351 = vmatpush1.msra.mxu0 0.0
      %352 = vmatprep.subr.mxu0 0.0
      %353 = vmatpush1.msra.mxu0 0.0
      %354 = vmatprep.subr.mxu0 0.0
      %355 = vmatpush1.msra.mxu0 0.0
      %356 = vmatprep.subr.mxu0 0.0
      %357 = vmatpush1.msra.mxu0 0.0
      %358 = vmatprep.subr.mxu0 0.0
      %359 = vmatpush1.msra.mxu0 0.0
      %360 = vmatprep.subr.mxu0 0.0
      %361 = vmatpush1.msra.mxu0 0.0
      %362 = vmatprep.subr.mxu0 0.0
      %363 = vmatpush1.msra.mxu0 0.0
      %364 = vmatprep.subr.mxu0 0.0
      %365 = vmatpush1.msra.mxu0 0.0
      %366 = vmatprep.subr.mxu0 0.0
      %367 = vmatpush1.msra.mxu0 0.0
      %368 = vmatprep.subr.mxu0 0.0
      %369 = vmatpush1.msra.mxu0 0.0
      %370 = vmatprep.subr.mxu0 0.0
      %371 = vmatpush1.msra.mxu0 0.0
      %372 = vmatprep.subr.mxu0 0.0
      %373 = vmatpush1.msra.mxu0 0.0
      %374 = vmatprep.subr.mxu0 0.0
      %375 = vmatpush1.msra.mxu0 0.0
      %376 = vmatprep.subr.mxu0 0.0
      %377 = vmatpush1.msra.mxu0 0.0
      %378 = vmatprep.subr.mxu0 0.0
      %379 = vmatpush1.msra.mxu0 0.0
      %380 = vmatprep.subr.mxu0 0.0
      %381 = vmatpush1.msra.mxu0 0.0
      %382 = vmatprep.subr.mxu0 0.0
      %383 = vmatpush1.msra.mxu0 0.0
      %384 = vmatprep.subr.mxu0 0.0
      %385 = vmatpush1.msra.mxu0 0.0
      %386 = vmatprep.subr.mxu0 0.0
      %387 = vmatpush1.msra.mxu0 0.0
      %388 = vmatprep.subr.mxu0 0.0
      %389 = vmatpush1.msra.mxu0 0.0
      %390 = vmatprep.subr.mxu0 0.0
      %391 = vmatpush1.msra.mxu0 0.0
      %392 = vmatprep.subr.mxu0 0.0
      %393 = vmatpush1.msra.mxu0 0.0
      %394 = vmatprep.subr.mxu0 0.0
      %395 = vmatpush1.msra.mxu0 0.0
      %396 = vmatprep.subr.mxu0 0.0
      %397 = vmatpush1.msra.mxu0 0.0
      %398 = vmatprep.subr.mxu0 0.0
      %399 = vmatpush1.msra.mxu0 0.0
      %400 = vmatprep.subr.mxu0 0.0
      %401 = vmatpush1.msra.mxu0 0.0
      %402 = vmatprep.subr.mxu0 0.0
      %403 = vmatpush1.msra.mxu0 0.0
      %404 = vmatprep.mubr.f32.mxu0 0.0
      %405 = vmatmul.mubr.f32.gmra.mrb[0].mxu0 %v338
      %v406 = vpop.f32.mrb[0].mxu0
      %v407 = vadd.f32 0.0, %v406
      %v408 = vpop.f32.mrb[0].mxu0
      %409 = vdwg.mxu0
      %v411 = vsel %vm336, %v333, 0
      %413 = vmatprep.subr.mxu0 0.0
      %414 = vmatpush1.msra.mxu0 %v310
      %415 = vmatprep.subr.mxu0 0.0
      %416 = vmatpush1.msra.mxu0 %v311
      %417 = vmatprep.subr.mxu0 0.0
      %418 = vmatpush1.msra.mxu0 0.0
      %419 = vmatprep.subr.mxu0 0.0
      %420 = vmatpush1.msra.mxu0 0.0
      %421 = vmatprep.subr.mxu0 0.0
      %422 = vmatpush1.msra.mxu0 0.0
      %423 = vmatprep.subr.mxu0 0.0
      %424 = vmatpush1.msra.mxu0 0.0
      %425 = vmatprep.subr.mxu0 0.0
      %426 = vmatpush1.msra.mxu0 0.0
      %427 = vmatprep.subr.mxu0 0.0
      %428 = vmatpush1.msra.mxu0 0.0
      %429 = vmatprep.subr.mxu0 0.0
      %430 = vmatpush1.msra.mxu0 0.0
      %431 = vmatprep.subr.mxu0 0.0
      %432 = vmatpush1.msra.mxu0 0.0
      %433 = vmatprep.subr.mxu0 0.0
      %434 = vmatpush1.msra.mxu0 0.0
      %435 = vmatprep.subr.mxu0 0.0
      %436 = vmatpush1.msra.mxu0 0.0
      %437 = vmatprep.subr.mxu0 0.0
      %438 = vmatpush1.msra.mxu0 0.0
      %439 = vmatprep.subr.mxu0 0.0
      %440 = vmatpush1.msra.mxu0 0.0
      %441 = vmatprep.subr.mxu0 0.0
      %442 = vmatpush1.msra.mxu0 0.0
      %443 = vmatprep.subr.mxu0 0.0
      %444 = vmatpush1.msra.mxu0 0.0
      %445 = vmatprep.subr.mxu0 0.0
      %446 = vmatpush1.msra.mxu0 0.0
      %447 = vmatprep.subr.mxu0 0.0
      %448 = vmatpush1.msra.mxu0 0.0
      %449 = vmatprep.subr.mxu0 0.0
      %450 = vmatpush1.msra.mxu0 0.0
      %451 = vmatprep.subr.mxu0 0.0
      %452 = vmatpush1.msra.mxu0 0.0
      %453 = vmatprep.subr.mxu0 0.0
      %454 = vmatpush1.msra.mxu0 0.0
      %455 = vmatprep.subr.mxu0 0.0
      %456 = vmatpush1.msra.mxu0 0.0
      %457 = vmatprep.subr.mxu0 0.0
      %458 = vmatpush1.msra.mxu0 0.0
      %459 = vmatprep.subr.mxu0 0.0
      %460 = vmatpush1.msra.mxu0 0.0
      %461 = vmatprep.subr.mxu0 0.0
      %462 = vmatpush1.msra.mxu0 0.0
      %463 = vmatprep.subr.mxu0 0.0
      %464 = vmatpush1.msra.mxu0 0.0
      %465 = vmatprep.subr.mxu0 0.0
      %466 = vmatpush1.msra.mxu0 0.0
      %467 = vmatprep.subr.mxu0 0.0
      %468 = vmatpush1.msra.mxu0 0.0
      %469 = vmatprep.subr.mxu0 0.0
      %470 = vmatpush1.msra.mxu0 0.0
      %471 = vmatprep.subr.mxu0 0.0
      %472 = vmatpush1.msra.mxu0 0.0
      %473 = vmatprep.subr.mxu0 0.0
      %474 = vmatpush1.msra.mxu0 0.0
      %475 = vmatprep.subr.mxu0 0.0
      %476 = vmatpush1.msra.mxu0 0.0
      %477 = vmatprep.mubr.f32.mxu0 0.0
      %478 = vmatmul.mubr.f32.gmra.mrb[0].mxu0 %v411
      %v479 = vpop.f32.mrb[0].mxu0
      %v480 = vadd.f32 %v407, %v479
      %v481 = vpop.f32.mrb[0].mxu0
      %482 = vdwg.mxu0
      %v483 = vld [vmem:[%s299] sm:$0xff]
      %485 = vset.pattern.permute.xlu0 0
      %486 = vperm.xlu0 %485, %v483
      %v487 = vpop.permute.xlu0 %486
      %v489 = vadd.f32 %v480, %v487
      %490 = vst [vmem:[%s309] sm:$0xff] %v489
      %p491 = scmp.lt.s32.totalorder %s20, 1
      %s492 = scalar_select %p491, %s20, 1
      %p493 = scmp.lt.s32.totalorder %s21, 0
      %s494 = scalar_select %p493, %s21, 0
      %p495 = scmp.lt.s32.totalorder %s22, 0
      %s496 = scalar_select %p495, %s22, 0
      %s497 = sadd.s32 %s496, %s494
      %s498 = sadd.s32 %s497, %s492
      %s499 = smul.addr %s498, 8
      %s500 = scalar_lea.vmem %s4, %s499
      // Predicated region
      $region37: #{conv1d_downsample.1} parent=35 // pred_check
        %p501 = pneg %p164
      $region38: #{conv1d_downsample.1} parent=35 // pred_check_branch
        %503 = sbr.rel (%p501) target = $region40
      $region39: #{conv1d_downsample.1} parent=35 // pred_region
        _
      $region40: #{conv1d_downsample.1} parent=35 // pred_fallthru
        _
    $region36: #{conv1d_downsample.1} parent=5 // pred_fallthru
      _
    %p504 = scmp.le.s32.totalorder 2, %s10
    // Predicated region
    $region41: #{conv1d_downsample.1} parent=5 // pred_check
      %p505 = pneg %p504
    $region42: #{conv1d_downsample.1} parent=5 // pred_check_branch
      %507 = sbr.rel (%p505) target = $region44
    $region43: #{conv1d_downsample.1} parent=5 // pred_region
      %s508 = ssub.s32 %s10, 2
      // Predicated region
      $region45: #{conv1d_downsample.1} parent=43 // pred_check
        %p509 = pneg %p170
      $region46: #{conv1d_downsample.1} parent=43 // pred_check_branch
        %511 = sbr.rel (%p509) target = $region48
      $region47: #{conv1d_downsample.1} parent=43 // pred_region
        %p512 = scmp.lt.s32.totalorder %s23, 1
        %s513 = scalar_select %p512, %s23, 1
        %p514 = scmp.lt.s32.totalorder %s24, 0
        %s515 = scalar_select %p514, %s24, 0
        %p516 = scmp.lt.s32.totalorder %s25, 0
        %s517 = scalar_select %p516, %s25, 0
        %s518 = sadd.s32 %s517, %s515
        %s519 = sadd.s32 %s518, %s513
        %s520 = smul.addr %s519, 8
        %s521 = scalar_lea.vmem %s4, %s520
      $region48: #{conv1d_downsample.1} parent=43 // pred_fallthru
        _
    $region44: #{conv1d_downsample.1} parent=5 // pred_fallthru
      _
  $region6: #{conv1d_downsample.1} parent=0 // loop_footer
    %s14 = sadd.s32 1, %s10
  $region7: #{conv1d_downsample.1} parent=0 // loop_footer_branch
    %9 = sbr.rel target = $region3
  $region8: #{conv1d_downsample.1} parent=0 // loop_exit
    _

</llo_original>
